<compile_context>
chip_gen: v7x
topology: tpu7x:2x2x1
jax: 0.10.0
libtpu: 0.0.40
codegen_flags: <defaults>
</compile_context>

<pallas_src>
import functools

import jax
import jax.numpy as jnp
from jax.experimental import pallas as pl
from jax.experimental.pallas import tpu as pltpu


# ----------------------------------------------------------------------------
# Small helpers
# ----------------------------------------------------------------------------
def _round_up(n, m):
    return (n + m - 1) // m * m


def _cdiv(a, b):
    return (a + b - 1) // b


def _vmem_caps():
    """(tile-selection budget, scoped-VMEM limit handed to Mosaic)."""
    try:
        phys = int(pltpu.get_tpu_info().vmem_capacity_bytes)
    except Exception:
        phys = 64 * 1024 * 1024          # v7x-safe fallback
    return int(phys * 0.70), int(phys * 0.85)


def _resident_spec(block_shape, index_map):
    """Single-buffered BlockSpec for blocks whose index_map is constant
    (resident W / bias in the fused path): the default double buffer would be
    a never-used second VMEM copy."""
    try:
        return pl.BlockSpec(block_shape, index_map, pipeline_mode=pl.Buffered(1))
    except Exception:
        return pl.BlockSpec(block_shape, index_map)


def _pick_row_tile(rows, block_rows):
    """Row tile: multiple of 8; prefers an exact divisor of `rows` (no row
    padding -> no output slice copy); aims for >=2 tiles when rows >= 256 so
    both v7x TensorCores get work on the parallel axes."""
    rows8 = _round_up(rows, 8)
    upper = min(_round_up(max(block_rows, 8), 8), rows8)
    if rows8 >= 256:
        upper = min(upper, _round_up(rows8 // 2, 8))
    if rows % 8 == 0:
        for tm in range(upper, 127, -8):          # only consider MXU-friendly tiles
            if rows % tm == 0:
                return tm, rows // tm, rows
    n_tiles = max(_cdiv(rows, upper), 1)
    tm = _round_up(_cdiv(rows, n_tiles), 8)
    n_rt = _cdiv(rows, tm)
    return tm, n_rt, n_rt * tm


def _pick_padded_vocab(vocab, block_vocab):
    """Padded vocab width chosen once at weight-prep time so a lane-dense tile
    in [256, block_vocab] divides it exactly (common LM vocabs need no extra
    padding and no final slice)."""
    bv = max(256, _round_up(block_vocab, 128))
    v128 = _round_up(vocab, 128)
    if v128 <= bv:
        return v128
    for tv in range(bv, 255, -128):
        if v128 % tv == 0:
            return v128
    return _round_up(vocab, bv)


def _pick_vocab_tile(vocab_p, d_model, tm, rows_p, w_isz, x_isz, inter_isz,
                     block_vocab, budget):
    """Largest multiple-of-128 divisor of vocab_p whose pass-1 working set
    (double-buffered W + logits + x + LSE scratch) fits the VMEM budget."""
    fixed = 2 * tm * d_model * x_isz           # x block, double-buffered
    fixed += 2 * rows_p * 128 * 4              # m/l scratch (lane padded to 128)
    fixed += 2 * tm * 128 * 4                  # lse out block, double-buffered
    fixed += 2 * 1024 * 1024                   # slack / compiler scratch
    per_tv = 2 * d_model * w_isz               # W block, double-buffered
    per_tv += 2 * tm * inter_isz               # logits out block, double-buffered
    per_tv += 2 * 8 * 4                        # bias block
    cap = max((budget - fixed) // per_tv, 128)
    cap = min(cap, max(128, _round_up(block_vocab, 128)), vocab_p)
    cap = max(cap // 128 * 128, 128)
    for tv in range(int(cap), 255, -128):
        if vocab_p % tv == 0:
            return tv
    return 128                                 # always divides (vocab_p % 128 == 0)


# ----------------------------------------------------------------------------
# Kernels
# ----------------------------------------------------------------------------
def _fused_kernel(x_ref, w_ref, b_ref, o_ref):
    """Single-pass path: whole (padded) vocab resident in one lane-dense block.

    x_ref: (tm, d_model)  w_ref: (d_model, V_p)  b_ref: (1, V_p) f32
    """
    logits = jnp.dot(x_ref[...], w_ref[...], preferred_element_type=jnp.float32)
    logits = logits + b_ref[...]
    m = jnp.max(logits, axis=-1, keepdims=True)
    shifted = logits - m
    lse = jnp.log(jnp.sum(jnp.exp(shifted), axis=-1, keepdims=True))
    o_ref[...] = (shifted - lse).astype(o_ref.dtype)


def _logits_lse_kernel(x_ref, w_ref, b_ref, logits_ref, lse_ref, m_sc, l_sc):
    """Vocab-tiled pass 1.  Grid = (n_vt, n_rt): vocab OUTER (sequential,
    carries the online-LSE state; W tile fetched once per vocab tile),
    rows INNER.  Running max / sum-exp per row tile live in VMEM scratch of
    shape (n_rt, tm, 1) indexed by the row-tile program id."""
    j = pl.program_id(0)                     # vocab tile (outer)
    i = pl.program_id(1)                     # row tile (inner)
    stat_shape = (m_sc.shape[1], m_sc.shape[2])

    @pl.when(j == 0)
    def _():
        m_sc[i] = jnp.full(stat_shape, -jnp.inf, jnp.float32)
        l_sc[i] = jnp.zeros(stat_shape, jnp.float32)

    s = jnp.dot(x_ref[...], w_ref[...], preferred_element_type=jnp.float32)
    s = s + b_ref[...]                       # (tm, tv) f32
    logits_ref[...] = s.astype(logits_ref.dtype)

    m_prev = m_sc[i]
    m_new = jnp.maximum(m_prev, jnp.max(s, axis=-1, keepdims=True))
    l_new = l_sc[i] * jnp.exp(m_prev - m_new) + jnp.sum(
        jnp.exp(s - m_new), axis=-1, keepdims=True)
    m_sc[i] = m_new
    l_sc[i] = l_new
    # Running LSE; the block written at j == n_vt - 1 is the final one used
    # by pass 2 (each (j, i) lse block is written exactly once).
    lse_ref[0] = m_new + jnp.log(l_new)


def _normalize_kernel(logits_ref, lse_ref, o_ref):
    """Vocab-tiled pass 2: log_softmax = logits - lse (lane-dense elementwise,
    in place when the logits buffer is aliased to the output)."""
    o_ref[...] = (logits_ref[...].astype(jnp.float32) - lse_ref[0]).astype(o_ref.dtype)


# ----------------------------------------------------------------------------
# Jitted implementation (weights already cast / padded)
# ----------------------------------------------------------------------------
@functools.partial(
    jax.jit,
    static_argnames=("vocab", "out_dtype", "block_rows", "block_vocab",
                     "max_fused_vocab"),
)
def _output_layer_prepared(x, w_p, b_p, *, vocab, out_dtype, block_rows,
                           block_vocab, max_fused_vocab):
    """log_softmax(x @ w + b, axis=-1) with pre-prepared weights.

    x:   (..., d_model)
    w_p: (d_model, vocab_p)  compute dtype, vocab padded to a 128 multiple
    b_p: (1, vocab_p) f32    padded columns hold -1e30 (exp underflows to 0)
    """
    *lead, d_model = x.shape
    vocab_p = w_p.shape[1]
    rows = 1
    for s in lead:
        rows *= s
    out_dtype = jnp.dtype(out_dtype)
    out_isz = out_dtype.itemsize
    w_isz = jnp.dtype(w_p.dtype).itemsize
    x_isz = w_isz

    tm, n_rt, rows_p = _pick_row_tile(rows, block_rows)

    x2 = x.reshape(rows, d_model).astype(w_p.dtype)
    if rows_p != rows:
        x2 = jnp.pad(x2, ((0, rows_p - rows), (0, 0)))

    budget, vmem_limit = _vmem_caps()

    # ---------------- fused single-pass path (resident W) ----------------
    fused_bytes = (d_model * vocab_p * w_isz       # resident W (single-buffered)
                   + 8 * vocab_p * 4               # resident bias
                   + 2 * tm * d_model * x_isz      # x, double-buffered
                   + 2 * tm * vocab_p * out_isz    # out, double-buffered
                   + 2 * 1024 * 1024)              # slack
    if vocab_p <= max_fused_vocab and fused_bytes <= budget:
        out = pl.pallas_call(
            _fused_kernel,
            out_shape=jax.ShapeDtypeStruct((rows_p, vocab_p), out_dtype),
            grid_spec=pltpu.PrefetchScalarGridSpec(
                num_scalar_prefetch=0,
                grid=(n_rt,),
                in_specs=[
                    pl.BlockSpec((tm, d_model), lambda i: (i, 0)),       # x (streamed)
                    _resident_spec((d_model, vocab_p), lambda i: (0, 0)),  # W
                    _resident_spec((1, vocab_p), lambda i: (0, 0)),        # bias
                ],
                out_specs=pl.BlockSpec((tm, vocab_p), lambda i: (i, 0)),
            ),
            compiler_params=pltpu.CompilerParams(
                dimension_semantics=("parallel",),
                vmem_limit_bytes=vmem_limit,
            ),
        )(x2, w_p, b_p)
    else:
        # -------------- vocab-tiled two-pass path (LM vocabularies) -------
        inter_dtype = out_dtype if out_isz <= 2 else jnp.dtype(jnp.float32)
        inter_isz = jnp.dtype(inter_dtype).itemsize
        tv = _pick_vocab_tile(vocab_p, d_model, tm, rows_p, w_isz, x_isz,
                              inter_isz, block_vocab, budget)
        n_vt = vocab_p // tv

        logits, lse_all = pl.pallas_call(
            _logits_lse_kernel,
            out_shape=(
                jax.ShapeDtypeStruct((rows_p, vocab_p), inter_dtype),
                jax.ShapeDtypeStruct((n_vt, rows_p, 1), jnp.float32),
            ),
            grid_spec=pltpu.PrefetchScalarGridSpec(
                num_scalar_prefetch=0,
                grid=(n_vt, n_rt),                 # vocab OUTER: W fetched once
                in_specs=[
                    pl.BlockSpec((tm, d_model), lambda j, i: (i, 0)),   # x
                    pl.BlockSpec((d_model, tv), lambda j, i: (0, j)),   # W
                    pl.BlockSpec((1, tv), lambda j, i: (0, j)),         # bias
                ],
                out_specs=[
                    pl.BlockSpec((tm, tv), lambda j, i: (i, j)),        # logits
                    pl.BlockSpec((1, tm, 1), lambda j, i: (j, i, 0)),   # running lse
                ],
                scratch_shapes=[
                    pltpu.VMEM((n_rt, tm, 1), jnp.float32),             # running max
                    pltpu.VMEM((n_rt, tm, 1), jnp.float32),             # running sum-exp
                ],
            ),
            compiler_params=pltpu.CompilerParams(
                dimension_semantics=("arbitrary", "arbitrary"),
                vmem_limit_bytes=vmem_limit,
            ),
        )(x2, w_p, b_p)

        alias = {0: 0} if jnp.dtype(inter_dtype) == out_dtype else {}
        out = pl.pallas_call(
            _normalize_kernel,
            out_shape=jax.ShapeDtypeStruct((rows_p, vocab_p), out_dtype),
            grid_spec=pltpu.PrefetchScalarGridSpec(
                num_scalar_prefetch=0,
                grid=(n_rt, n_vt),
                in_specs=[
                    pl.BlockSpec((tm, tv), lambda i, j: (i, j)),
                    pl.BlockSpec((1, tm, 1), lambda i, j: (n_vt - 1, i, 0)),
                ],
                out_specs=pl.BlockSpec((tm, tv), lambda i, j: (i, j)),
            ),
            compiler_params=pltpu.CompilerParams(
                dimension_semantics=("parallel", "parallel"),
                vmem_limit_bytes=vmem_limit,
            ),
            input_output_aliases=alias,
        )(logits, lse_all)

    if rows_p != rows or vocab_p != vocab:
        out = out[:rows, :vocab]
    return out.reshape(*lead, vocab)


# ----------------------------------------------------------------------------
# Public wrappers
# ----------------------------------------------------------------------------
def make_output_layer(w, b, *, compute_dtype=jnp.bfloat16, out_dtype=None,
                      block_rows=256, block_vocab=2048, max_fused_vocab=8192):
    """Prepare (cast + pad) the projection weights once; return x -> log-probs.

    w: (d_model, vocab)  -- nn.Linear weight, already transposed
    b: (vocab,)
    compute_dtype=bfloat16 quantizes x / W for the MXU (f32 accumulation and
    f32 softmax); use jnp.float32 for exact parity with the f32 module.
    """
    d_model, vocab = w.shape
    cd = jnp.dtype(jnp.float32 if compute_dtype is None else compute_dtype)
    vocab_p = _pick_padded_vocab(vocab, block_vocab)

    # One-time weight prep (hoisted out of the per-call path).
    w_p = w.astype(cd)
    b_p = b.astype(jnp.float32).reshape(1, vocab)
    if vocab_p != vocab:
        w_p = jnp.pad(w_p, ((0, 0), (0, vocab_p - vocab)))
        b_p = jnp.pad(b_p, ((0, 0), (0, vocab_p - vocab)), constant_values=-1e30)

    def apply(x):
        od = x.dtype if out_dtype is None else out_dtype
        return _output_layer_prepared(
            x, w_p, b_p, vocab=vocab, out_dtype=jnp.dtype(od).name,
            block_rows=block_rows, block_vocab=block_vocab,
            max_fused_vocab=max_fused_vocab)

    return apply


def output_layer(x, w, b, **kwargs):
    """One-shot convenience wrapper.  Prefer make_output_layer(): it hoists
    the per-call weight cast / pad (a full read+write of W) out of the loop."""
    return make_output_layer(w, b, **kwargs)(x)


# ----------------------------------------------------------------------------
# Self-test
# ----------------------------------------------------------------------------
if __name__ == "__main__":
    key = jax.random.PRNGKey(0)
    kx, kw, kb, kx2, kw2, kb2, kx3, kw3, kb3 = jax.random.split(key, 9)

    def ref_fn(x, w, b):
        # Reference with the same bf16 operand quantization the kernel uses
        # (f32 accumulation / f32 softmax in both).
        xq = x.astype(jnp.bfloat16).astype(jnp.float32)
        wq = w.astype(jnp.bfloat16).astype(jnp.float32)
        return jax.nn.log_softmax(
            jnp.einsum("...d,dv->...v", xq, wq) + b, axis=-1)

    d_model = 32
    bound = 1.0 / (d_model ** 0.5)

    # --- Test 1: module-sized shapes -> fused single-pass path. ---
    B, S, vocab = 2, 8, 128
    w = jax.random.uniform(kw, (d_model, vocab), jnp.float32, -bound, bound)
    b = jax.random.uniform(kb, (vocab,), jnp.float32, -bound, bound)
    x = jax.random.normal(kx, (B, S, d_model), jnp.float32)

    layer = make_output_layer(w, b)
    out = jax.block_until_ready(layer(x))
    ref = ref_fn(x, w, b)
    assert out.shape == (B, S, vocab) and out.dtype == x.dtype
    assert jnp.allclose(out, ref, atol=2e-3, rtol=1e-3), \
        float(jnp.max(jnp.abs(out - ref)))

    # --- Test 2: forced vocab-tiled two-pass path (online LSE, W resident per
    #     vocab tile, multiple row tiles, logits aliased into the output). ---
    B2, S2, vocab2 = 2, 16, 512
    w2 = jax.random.uniform(kw2, (d_model, vocab2), jnp.float32, -bound, bound)
    b2 = jax.random.uniform(kb2, (vocab2,), jnp.float32, -bound, bound)
    x2 = jax.random.normal(kx2, (B2, S2, d_model), jnp.float32)

    layer2 = make_output_layer(w2, b2, block_rows=16, block_vocab=256,
                               max_fused_vocab=0)
    out2 = jax.block_until_ready(layer2(x2))
    ref2 = ref_fn(x2, w2, b2)
    assert out2.shape == (B2, S2, vocab2)
    assert jnp.allclose(out2, ref2, atol=2e-3, rtol=1e-3), \
        float(jnp.max(jnp.abs(out2 - ref2)))

    # --- Test 3: ragged rows / vocab (padding + final slice paths). ---
    B3, S3, vocab3 = 3, 5, 120
    w3 = jax.random.uniform(kw3, (d_model, vocab3), jnp.float32, -bound, bound)
    b3 = jax.random.uniform(kb3, (vocab3,), jnp.float32, -bound, bound)
    x3 = jax.random.normal(kx3, (B3, S3, d_model), jnp.float32)

    out3 = jax.block_until_ready(output_layer(x3, w3, b3))
    ref3 = ref_fn(x3, w3, b3)
    assert out3.shape == (B3, S3, vocab3)
    assert jnp.allclose(out3, ref3, atol=2e-3, rtol=1e-3), \
        float(jnp.max(jnp.abs(out3 - ref3)))

    print("KERNEL_OK")
</pallas_src>

<mosaic_0001>
module attributes {stable_mosaic.version = 11 : i64} {
  func.func @_fused_kernel(%arg0: i32, %arg1: memref<16x32xbf16, #tpu.memory_space<vmem>>, %arg2: memref<32x128xbf16, #tpu.memory_space<vmem>>, %arg3: memref<1x128xf32, #tpu.memory_space<vmem>>, %arg4: memref<16x128xf32, #tpu.memory_space<vmem>>) attributes {dimension_semantics = [#tpu.dimension_semantics<parallel>], iteration_bounds = array<i64: 1>, scalar_prefetch = 0 : i64, scratch_operands = 0 : i64, tpu.core_type = #tpu.core_type<tc>, window_params = [{transform_indices = @transform_0, window_bounds = array<i64: 16, 32>}, {pipeline_mode = #tpu.pipeline_mode<synchronous>, transform_indices = @transform_1, window_bounds = array<i64: 32, 128>}, {pipeline_mode = #tpu.pipeline_mode<synchronous>, transform_indices = @transform_2, window_bounds = array<i64: 1, 128>}, {transform_indices = @transform_3, window_bounds = array<i64: 16, 128>}]} {
    %c0 = arith.constant 0 : index
    %c0_0 = arith.constant 0 : index
    %0 = vector.load %arg1[%c0, %c0_0] : memref<16x32xbf16, #tpu.memory_space<vmem>>, vector<16x32xbf16>
    %c0_1 = arith.constant 0 : index
    %c0_2 = arith.constant 0 : index
    %1 = vector.load %arg2[%c0_1, %c0_2] : memref<32x128xbf16, #tpu.memory_space<vmem>>, vector<32x128xbf16>
    %cst = arith.constant dense<0.000000e+00> : vector<16x128xf32>
    %2 = tpu.matmul %0, %1, %cst {dimension_numbers = #tpu.dot_dimension_numbers<[1], [0], [0], [1], [0, 0, 1, 1], [], []>} : vector<16x32xbf16>, vector<32x128xbf16>, vector<16x128xf32> -> vector<16x128xf32>
    %c0_3 = arith.constant 0 : index
    %c0_4 = arith.constant 0 : index
    %3 = vector.load %arg3[%c0_3, %c0_4] : memref<1x128xf32, #tpu.memory_space<vmem>>, vector<1x128xf32>
    %4 = vector.broadcast %3 : vector<1x128xf32> to vector<16x128xf32>
    %5 = arith.addf %2, %4 : vector<16x128xf32>
    %cst_5 = arith.constant dense<0xFF800000> : vector<16xf32>
    %6 = vector.multi_reduction <maximumf>, %5, %cst_5 [1] : vector<16x128xf32> to vector<16xf32>
    %7 = vector.shape_cast %6 : vector<16xf32> to vector<16x1xf32>
    %8 = vector.broadcast %7 : vector<16x1xf32> to vector<16x128xf32>
    %9 = arith.subf %5, %8 : vector<16x128xf32>
    %10 = math.exp %9 : vector<16x128xf32>
    %cst_6 = arith.constant dense<0.000000e+00> : vector<16xf32>
    %11 = vector.multi_reduction <add>, %10, %cst_6 [1] : vector<16x128xf32> to vector<16xf32>
    %12 = vector.shape_cast %11 : vector<16xf32> to vector<16x1xf32>
    %13 = math.log %12 : vector<16x1xf32>
    %14 = vector.broadcast %13 : vector<16x1xf32> to vector<16x128xf32>
    %15 = arith.subf %9, %14 : vector<16x128xf32>
    %c0_7 = arith.constant 0 : index
    %c0_8 = arith.constant 0 : index
    %16 = vector.load %arg4[%c0_7, %c0_8] : memref<16x128xf32, #tpu.memory_space<vmem>>, vector<16x128xf32>
    tpu.vector_store %arg4[%c0_7, %c0_8], %15 {strides = array<i32>} : memref<16x128xf32, #tpu.memory_space<vmem>>, vector<16x128xf32>,
    return
  }
  func.func @transform_0(%arg0: i32) -> (i32, i32) {
    %c0_i32 = arith.constant 0 : i32
    %c0_i32_0 = arith.constant 0 : i32
    return %arg0, %c0_i32 : i32, i32
  }
  func.func @transform_1(%arg0: i32) -> (i32, i32) {
    %c0_i32 = arith.constant 0 : i32
    %c0_i32_0 = arith.constant 0 : i32
    %c0_i32_1 = arith.constant 0 : i32
    return %c0_i32, %c0_i32_0 : i32, i32
  }
  func.func @transform_2(%arg0: i32) -> (i32, i32) {
    %c0_i32 = arith.constant 0 : i32
    %c0_i32_0 = arith.constant 0 : i32
    %c0_i32_1 = arith.constant 0 : i32
    return %c0_i32, %c0_i32_0 : i32, i32
  }
  func.func @transform_3(%arg0: i32) -> (i32, i32) {
    %c0_i32 = arith.constant 0 : i32
    %c0_i32_0 = arith.constant 0 : i32
    return %arg0, %c0_i32 : i32, i32
  }
}

</mosaic_0001>

<llo_original>
// kernel: _output_layer_prepared.1
$region0: #{_output_layer_prepared.1}
  #allocation0 [shape = 'u32[]', space=smem, size = 0x4, offset = 0x4, fixed_abs, tag = 'smem constant byte address 0x4 - core index']
  #allocation1 [shape = 'u32[144,128]{1,0:T(1,128)}', space=vmem, size = 0x12000, scoped, tag = 'internal scratch']
  %s0 = inlined_call_operand.vmem [shape: bf16[16,32], index: 0, kind: input, shape index: {}]
  %s1 = inlined_call_operand.vmem [shape: bf16[32,128], index: 1, kind: input, shape index: {}]
  %s2 = inlined_call_operand.vmem [shape: f32[1,128], index: 2, kind: input, shape index: {}]
  %s3 = inlined_call_operand.hbm [shape: f32[16,128], index: 3, kind: output, shape index: {}]
  %s4 = sld [smem:[#allocation0]]
  $region22: #{_output_layer_prepared.1} parent=0
    _
  %s6 = ssub.s32 1, %s4
  %s7 = scalar_select 0, %s6, %s4
  $region1: #{_output_layer_prepared.1} parent=0
    #allocation2 [shape = 'u8[8192]{0}', space=vmem, size = 0x2000, scoped, tag = 'output window, operand 0, single buffered']
    #allocation3 [shape = 's32[1]{0}', space=sflag, size = 0x4, scoped, tag = 'scoped memory for _output_layer_prepared.1']
    %8 = vsyncpa [#allocation3], 0
    // Predicated region
    $region2: #{_output_layer_prepared.1} parent=1 // pred_check
      _
    $region3: #{_output_layer_prepared.1} parent=1 // pred_check_branch
      %10 = sbr.rel (0) target = $region5
    $region4: #{_output_layer_prepared.1} parent=1 // pred_region
      _
    $region5: #{_output_layer_prepared.1} parent=1 // pred_fallthru
      _
    // Predicated region
    $region6: #{_output_layer_prepared.1} parent=1 // pred_check
      _
    $region7: #{_output_layer_prepared.1} parent=1 // pred_check_branch
      %12 = sbr.rel (0) target = $region9
    $region8: #{_output_layer_prepared.1} parent=1 // pred_region
      _
    $region9: #{_output_layer_prepared.1} parent=1 // pred_fallthru
      _
    // Predicated region
    $region10: #{_output_layer_prepared.1} parent=1 // pred_check
      _
    $region11: #{_output_layer_prepared.1} parent=1 // pred_check_branch
      %14 = sbr.rel (0) target = $region13
    $region12: #{_output_layer_prepared.1} parent=1 // pred_region
      _
    $region13: #{_output_layer_prepared.1} parent=1 // pred_fallthru
      _
    %v16 = vld [vmem:[%s0] sm:$0xf]
    %v17 = vld [vmem:[%s0 + $0x4] sm:$0xf]
    %v18 = vld [vmem:[%s1] sm:$0xf]
    %v19 = vld [vmem:[%s1 + $0x4] sm:$0xf]
    %v20 = vld [vmem:[%s1 + $0x8] sm:$0xf]
    %v21 = vld [vmem:[%s1 + $0xc] sm:$0xf]
    %v22 = vld [vmem:[%s2] sm:$0x1]
    %v24 = vlaneseq
    %v25 = vshrl.u32 %v24, 7
    %v26 = vsub.s32 0, %v25
    %v27 = vrot.slane %v22, %v26
    %v31 = vunpack.c.l.b16 %v16
    %v32 = vunpack.c.l.b16 %v17
    %v33 = vpack.c.b16 %v32, %v31
    %v38 = vunpack.c.l.b16 %v18
    %v39 = vunpack.c.l.b16 %v19
    %v40 = vunpack.c.l.b16 %v20
    %v41 = vunpack.c.l.b16 %v21
    %v42 = vpack.c.b16 %v39, %v38
    %v43 = vpack.c.b16 %v41, %v40
    %vm46 = vcmask 261120
    %v48 = vsel %vm46, %v33, 0
    %50 = vmatprep.subr.bf16.mxu0 0
    %51 = vmatpush1.bf16.msra.mxu0 %v42
    %52 = vmatprep.subr.bf16.mxu0 0
    %53 = vmatpush1.bf16.msra.mxu0 %v43
    %54 = vmatprep.subr.bf16.mxu0 0
    %55 = vmatpush1.bf16.msra.mxu0 0
    %56 = vmatprep.subr.bf16.mxu0 0
    %57 = vmatpush1.bf16.msra.mxu0 0
    %58 = vmatprep.subr.bf16.mxu0 0
    %59 = vmatpush1.bf16.msra.mxu0 0
    %60 = vmatprep.subr.bf16.mxu0 0
    %61 = vmatpush1.bf16.msra.mxu0 0
    %62 = vmatprep.subr.bf16.mxu0 0
    %63 = vmatpush1.bf16.msra.mxu0 0
    %64 = vmatprep.subr.bf16.mxu0 0
    %65 = vmatpush1.bf16.msra.mxu0 0
    %66 = vmatprep.subr.bf16.mxu0 0
    %67 = vmatpush1.bf16.msra.mxu0 0
    %68 = vmatprep.subr.bf16.mxu0 0
    %69 = vmatpush1.bf16.msra.mxu0 0
    %70 = vmatprep.subr.bf16.mxu0 0
    %71 = vmatpush1.bf16.msra.mxu0 0
    %72 = vmatprep.subr.bf16.mxu0 0
    %73 = vmatpush1.bf16.msra.mxu0 0
    %74 = vmatprep.subr.bf16.mxu0 0
    %75 = vmatpush1.bf16.msra.mxu0 0
    %76 = vmatprep.subr.bf16.mxu0 0
    %77 = vmatpush1.bf16.msra.mxu0 0
    %78 = vmatprep.subr.bf16.mxu0 0
    %79 = vmatpush1.bf16.msra.mxu0 0
    %80 = vmatprep.subr.bf16.mxu0 0
    %81 = vmatpush1.bf16.msra.mxu0 0
    %82 = vmatprep.mubr.bf16.mxu0 0
    %83 = vmatmul.mubr.bf16.gmra.mrb[0].mxu0 %v48
    %v84 = vpop.f32.mrb[0].mxu0
    %v85 = vadd.f32 %v27, %v84
    %v86 = vpop.f32.mrb[0].mxu0
    %v87 = vpop.f32.mrb[0].mxu0
    %v88 = vadd.f32 %v27, %v87
    %v89 = vpop.f32.mrb[0].mxu0
    %90 = vdwg.mxu0
    %91 = vmax.xlane.f32.xlu0 %v85
    %v92 = vpop.xlane.xlu0 %91
    %93 = vmax.xlane.f32.xlu0 %v88
    %v94 = vpop.xlane.xlu0 %93
    %v95 = vsub.f32 %v85, %v92
    %v96 = vsub.f32 %v88, %v94
    %v97 = vmul.f32 %v95, 1.442695
    %v98 = vpow.pop %v97
    %v99 = vmul.f32 %v96, 1.442695
    %v100 = vpow.pop %v99
    %101 = vadd.xlane.f32.xlu0 %v98
    %v102 = vpop.xlane.xlu0 %101
    %103 = vadd.xlane.f32.xlu0 %v100
    %v104 = vpop.xlane.xlu0 %103
    %v105 = vlog2.pop %v102
    %v106 = vmul.f32 %v105, 0.6931472
    %v107 = vlog2.pop %v104
    %v108 = vmul.f32 %v107, 0.6931472
    %v109 = vsub.f32 %v95, %v106
    %v110 = vsub.f32 %v96, %v108
    %111 = vst [vmem:[#allocation2] sm:$0xff] %v109
    %112 = vst [vmem:[#allocation2 + $0x8] sm:$0xff] %v110
    // Predicated region
    $region14: #{_output_layer_prepared.1} parent=1 // pred_check
      _
    $region15: #{_output_layer_prepared.1} parent=1 // pred_check_branch
      %114 = sbr.rel (0) target = $region17
    $region16: #{_output_layer_prepared.1} parent=1 // pred_region
      %s116 = ssub.s32 256, 256
      %117 = vsyncadd [#allocation3], %s116
      %s118 = sshll.u32 [#allocation2], 4
      %s119 = int_to_ptr.vmem [resolvable:$true] %s118
      %124 = dma.vmem_to_hbm [thread:$0]  %s119, 256, %s3, [#allocation3], 128, 128, 8
    $region17: #{_output_layer_prepared.1} parent=1 // pred_fallthru
      _
    // Predicated region
    $region18: #{_output_layer_prepared.1} parent=1 // pred_check
      _
    $region19: #{_output_layer_prepared.1} parent=1 // pred_check_branch
      %126 = sbr.rel (0) target = $region21
    $region20: #{_output_layer_prepared.1} parent=1 // pred_region
      %127 = dma.done [#allocation3], 256
    $region21: #{_output_layer_prepared.1} parent=1 // pred_fallthru
      _
    %128 = vsyncpa [#allocation3], 1

</llo_original>
